<compile_context>
chip_gen: v6e
topology: v6e:2x2x1
jax: 0.10.0
libtpu: 0.0.40
codegen_flags: <defaults>
</compile_context>

<pallas_src>
import functools
import math

import jax
import jax.numpy as jnp
from jax.experimental import pallas as pl
from jax.experimental.pallas import tpu as pltpu


def _cdiv(a, b):
    return (a + b - 1) // b


def _round_up(a, b):
    return _cdiv(a, b) * b


def _upconv_kernel(xm_ref, xh_ref, wb_ref, b_ref, o_ref, xs_ref, *,
                   ksize, stride, tile_h, wl):
    """One (batch, output-row-tile) step.

    xm_ref: (1, tile_h, stride*Wp*C_in)  main reshaped rows for this tile
    xh_ref: (1, 8,      stride*Wp*C_in)  halo reshaped rows just below the main block
    wb_ref: (K, Wp*C_in, W_out*C_pad)    block-banded weights (constant across grid)
    b_ref : (1, W_out*C_pad)             lane-tiled bias (f32)
    o_ref : (1, tile_h, W_out*C_pad)     lane-dense output tile
    xs_ref: (tile_h + 8, stride*Wp*C_in) VMEM staging scratch (main + halo contiguous)
    """
    # Stage main + halo rows contiguously once; all operands below are static slices.
    xs_ref[0:tile_h, :] = xm_ref[0]
    xs_ref[tile_h:tile_h + 8, :] = xh_ref[0]

    acc = None
    for kh in range(ksize):
        roff, phase = kh // stride, kh % stride
        # Rows for kernel-row kh: contiguous sublane slice + contiguous lane slice
        # (H-stride lives in the lane fold, W-stride lives inside wb's band structure).
        rows = xs_ref[pl.ds(roff, tile_h), pl.ds(phase * wl, wl)]      # (tile_h, wl)
        part = jax.lax.dot_general(
            rows, wb_ref[kh],
            dimension_numbers=(((1,), (0,)), ((), ())),
            preferred_element_type=jnp.float32)                        # (tile_h, n_out)
        acc = part if acc is None else acc + part

    acc = acc + b_ref[...]                                             # f32 bias add
    o_ref[0] = acc.astype(o_ref.dtype)


def upsample_conv_layer(x_nchw, weight_oihw, bias, *, kernel_size, stride,
                        upsample=None, block_h=None, mxu_dtype=None):
    """Forward pass of UpsampleConLayer.

    x_nchw:      (N, C_in, H, W)
    weight_oihw: (C_out, C_in, KH, KW)   (PyTorch Conv2d layout)
    bias:        (C_out,)
    mxu_dtype:   None -> keep input dtype; jnp.bfloat16 recommended for perf.
    Returns (N, C_out, H_out, W_out).
    """
    assert stride >= 1 and kernel_size >= 1
    assert kernel_size - 1 <= 8 * stride, "halo block sized for (K-1) <= 8*stride"

    nb, c_in, _, _ = x_nchw.shape
    c_out = weight_oihw.shape[0]
    in_dtype = x_nchw.dtype
    cdt = jnp.dtype(mxu_dtype) if mxu_dtype is not None else jnp.dtype(in_dtype)
    pad = kernel_size // 2

    # ---- glue (plain JAX): NCHW -> NHWC, nearest upsample, reflection pad ----
    # TODO(synk): fuse these into the kernel to avoid the HBM round-trip.
    x = jnp.transpose(x_nchw, (0, 2, 3, 1)).astype(cdt)          # cast once, up front
    if upsample:
        x = jnp.repeat(x, upsample, axis=1)
        x = jnp.repeat(x, upsample, axis=2)
    hu, wu = x.shape[1], x.shape[2]
    assert hu > pad and wu > pad, "reflection pad wider than the upsampled input"
    x = jnp.pad(x, ((0, 0), (pad, pad), (pad, pad), (0, 0)), mode="reflect")
    hp, wp = hu + 2 * pad, wu + 2 * pad

    h_out = (hp - kernel_size) // stride + 1
    w_out = (wp - kernel_size) // stride + 1
    wl = wp * c_in                  # lane width of one original padded row
    wlr = wl * stride               # lane width after folding `stride` rows per row

    # ---- lane-dense output: pad C_out so w_out*c_pad % 128 == 0 when cheap ----
    c_step = 128 // math.gcd(w_out, 128)
    c_pad = _round_up(c_out, c_step)
    if c_pad > max(2 * c_out, c_out + 16):
        c_pad = c_out               # not worth the blow-up; accept masked stores
    n_out = w_out * c_pad

    # ---- generation-aware tile sizing + VMEM budget ----
    ib = jnp.dtype(cdt).itemsize
    ob = jnp.dtype(in_dtype).itemsize
    try:
        vmem_cap = int(pltpu.get_tpu_info().vmem_capacity_bytes)
    except Exception:
        vmem_cap = 64 * 1024 * 1024                     # conservative (v7x)
    if block_h is None:
        # ~4 MiB main block on 128 MiB parts (v5e/v6e), ~2 MiB on 64 MiB parts (v7x).
        target_main = (4 << 20) if vmem_cap >= (96 << 20) else (2 << 20)
        rows_main = target_main // max(1, wlr * ib)
        budget = vmem_cap // 2
        fixed = 2 * (8 * wlr * ib) + 2 * kernel_size * wl * n_out * ib + (2 << 20)
        per_row = 3 * wlr * ib + 2 * n_out * ob
        rows_fit = max(8, (budget - fixed) // max(1, per_row))
        block_h = max(8, (min(rows_main, rows_fit) // 8) * 8)
        block_h = min(block_h, _round_up(h_out, 8))
    assert block_h % 8 == 0
    num_t = _cdiv(h_out, block_h)
    hs = block_h // 8                                    # halo block-index stride

    # ---- pad rows so main + 8-row halo blocks of every tile are in bounds ----
    rows_needed = (num_t * block_h + 8) * stride
    if rows_needed > hp:
        x = jnp.pad(x, ((0, 0), (0, rows_needed - hp), (0, 0), (0, 0)))
    # Fold (stride rows, W, C_in) into the lane axis: pure metadata reshape.
    x = x.reshape(nb, rows_needed // stride, wlr)

    # ---- block-banded weights: (K, Wp*C_in, W_out*C_pad) ----
    w_hwio = jnp.transpose(weight_oihw, (2, 3, 1, 0)).astype(jnp.float32)
    if c_pad != c_out:
        w_hwio = jnp.pad(w_hwio, ((0, 0), (0, 0), (0, 0), (0, c_pad - c_out)))
    wi = jnp.arange(wp)[None, :, None]
    wo = jnp.arange(w_out)[None, None, :]
    kw = jnp.arange(kernel_size)[:, None, None]
    band = (wi == wo * stride + kw).astype(jnp.float32)            # (K, Wp, W_out)
    wb = jnp.einsum('qpw,kqic->kpiwc', band, w_hwio)               # (K,Wp,Ci,Wo,Cp)
    wb = wb.reshape(kernel_size, wl, n_out).astype(cdt)
    wb_bytes = 2 * kernel_size * wl * n_out * ib
    assert wb_bytes <= vmem_cap // 2, \
        "banded weight too large for VMEM; TODO(synk): tile the W axis"

    b_pad = bias.astype(jnp.float32)
    if c_pad != c_out:
        b_pad = jnp.pad(b_pad, (0, c_pad - c_out))
    b2d = jnp.tile(b_pad, (w_out,)).reshape(1, n_out)

    need = (2 * (block_h + 8) * wlr * ib          # double-buffered main + halo
            + 2 * block_h * n_out * ob            # double-buffered output
            + wb_bytes                            # weights (resident)
            + (block_h + 8) * wlr * ib            # staging scratch
            + (2 << 20))                          # headroom
    assert need <= int(vmem_cap * 0.8), "tile does not fit VMEM; shrink block_h"
    vmem_limit = int(min(max(2 * need, 32 << 20), int(vmem_cap * 0.8)))

    kernel = functools.partial(
        _upconv_kernel, ksize=kernel_size, stride=stride, tile_h=block_h, wl=wl)

    out = pl.pallas_call(
        kernel,
        out_shape=jax.ShapeDtypeStruct((nb, num_t * block_h, n_out), in_dtype),
        grid=(nb, num_t),
        in_specs=[
            # main reshaped rows of this tile
            pl.BlockSpec((1, block_h, wlr), lambda b, j: (b, j, 0)),
            # 8-row halo block immediately below the main block (same array, 2nd view)
            pl.BlockSpec((1, 8, wlr), lambda b, j: (b, (j + 1) * hs, 0)),
            # banded weights / bias: constant block index -> stays resident in VMEM
            pl.BlockSpec((kernel_size, wl, n_out), lambda b, j: (0, 0, 0)),
            pl.BlockSpec((1, n_out), lambda b, j: (0, 0)),
        ],
        out_specs=pl.BlockSpec((1, block_h, n_out), lambda b, j: (b, j, 0)),
        scratch_shapes=[pltpu.VMEM((block_h + 8, wlr), cdt)],
        compiler_params=pltpu.CompilerParams(
            dimension_semantics=("parallel", "parallel"),
            vmem_limit_bytes=vmem_limit),
    )(x, x, wb, b2d)

    out = out[:, :h_out, :].reshape(nb, h_out, w_out, c_pad)
    if c_pad != c_out:
        out = out[..., :c_out]
    return jnp.transpose(out, (0, 3, 1, 2))                        # back to NCHW


def _reference(x_nchw, weight_oihw, bias, *, kernel_size, stride, upsample=None):
    """Pure-JAX reference mirroring the PyTorch forward."""
    x = x_nchw
    if upsample:
        x = jnp.repeat(x, upsample, axis=2)
        x = jnp.repeat(x, upsample, axis=3)
    pad = kernel_size // 2
    x = jnp.pad(x, ((0, 0), (0, 0), (pad, pad), (pad, pad)), mode="reflect")
    out = jax.lax.conv_general_dilated(
        x, weight_oihw, window_strides=(stride, stride), padding="VALID",
        dimension_numbers=("NCHW", "OIHW", "NCHW"))
    return out + bias.reshape(1, -1, 1, 1)


if __name__ == "__main__":
    root = jax.random.PRNGKey(0)

    def check(idx, *, n, c_in, h, w, c_out, k, stride, upsample,
              block_h=None, mxu_dtype=None, atol=1e-4, rtol=1e-4):
        kx, kw_, kb = jax.random.split(jax.random.fold_in(root, idx), 3)
        x = jax.random.normal(kx, (n, c_in, h, w), dtype=jnp.float32)
        wgt = jax.random.normal(kw_, (c_out, c_in, k, k), dtype=jnp.float32) * 0.1
        b = jax.random.normal(kb, (c_out,), dtype=jnp.float32) * 0.1
        out = upsample_conv_layer(x, wgt, b, kernel_size=k, stride=stride,
                                  upsample=upsample, block_h=block_h,
                                  mxu_dtype=mxu_dtype)
        out = jax.block_until_ready(out)
        ref = _reference(x, wgt, b, kernel_size=k, stride=stride, upsample=upsample)
        assert out.shape == ref.shape, (idx, out.shape, ref.shape)
        err = float(jnp.max(jnp.abs(out - ref)))
        assert jnp.allclose(out, ref, atol=atol, rtol=rtol), (idx, err)

    # 1) Module config (in=4, out=8, k=3, stride=1, upsample=2), auto tile size.
    check(0, n=2, c_in=4, h=16, w=16, c_out=8, k=3, stride=1, upsample=2)
    # 2) Same, small explicit tile -> exercises halo + multi-step pipeline.
    check(1, n=2, c_in=4, h=16, w=16, c_out=8, k=3, stride=1, upsample=2, block_h=8)
    # 3) Non-divisible tail rows + C_out lane-padding path.
    check(2, n=1, c_in=4, h=15, w=12, c_out=8, k=3, stride=1, upsample=2, block_h=16)
    # 4) stride=2 path (H-stride folded into lanes, W-stride in the banded weight).
    check(3, n=1, c_in=4, h=16, w=16, c_out=8, k=3, stride=2, upsample=None)
    # 5) bf16 operands, f32 accumulation (the perf default on v5e/v6e/v7x).
    check(4, n=2, c_in=4, h=16, w=16, c_out=8, k=3, stride=1, upsample=2,
          mxu_dtype=jnp.bfloat16, atol=8e-2, rtol=5e-2)

    print("KERNEL_OK")
</pallas_src>

<mosaic_0001>
module attributes {stable_mosaic.version = 11 : i64} {
  func.func @_upconv_kernel(%arg0: i32, %arg1: i32, %arg2: memref<1x32x136xf32, #tpu.memory_space<vmem>>, %arg3: memref<1x8x136xf32, #tpu.memory_space<vmem>>, %arg4: memref<3x136x256xf32, #tpu.memory_space<vmem>>, %arg5: memref<1x256xf32, #tpu.memory_space<vmem>>, %arg6: memref<1x32x256xf32, #tpu.memory_space<vmem>>, %arg7: memref<40x136xf32, #tpu.memory_space<vmem>>) attributes {dimension_semantics = [#tpu.dimension_semantics<parallel>, #tpu.dimension_semantics<parallel>], iteration_bounds = array<i64: 2, 1>, scalar_prefetch = 0 : i64, scratch_operands = 1 : i64, tpu.core_type = #tpu.core_type<tc>, window_params = [{transform_indices = @transform_0, window_bounds = array<i64: 1, 32, 136>}, {transform_indices = @transform_1, window_bounds = array<i64: 1, 8, 136>}, {pipeline_mode = #tpu.pipeline_mode<synchronous>, transform_indices = @transform_2, window_bounds = array<i64: 3, 136, 256>}, {pipeline_mode = #tpu.pipeline_mode<synchronous>, transform_indices = @transform_3, window_bounds = array<i64: 1, 256>}, {transform_indices = @transform_4, window_bounds = array<i64: 1, 32, 256>}]} {
    %c0 = arith.constant 0 : index
    %c0_0 = arith.constant 0 : index
    %c0_1 = arith.constant 0 : index
    %0 = vector.load %arg2[%c0, %c0_0, %c0_1] : memref<1x32x136xf32, #tpu.memory_space<vmem>>, vector<1x32x136xf32>
    %1 = vector.shape_cast %0 : vector<1x32x136xf32> to vector<32x136xf32>
    %c0_2 = arith.constant 0 : index
    %c0_3 = arith.constant 0 : index
    %2 = vector.load %arg7[%c0_2, %c0_3] : memref<40x136xf32, #tpu.memory_space<vmem>>, vector<32x136xf32>
    tpu.vector_store %arg7[%c0_2, %c0_3], %1 {strides = array<i32>} : memref<40x136xf32, #tpu.memory_space<vmem>>, vector<32x136xf32>,
    %c0_4 = arith.constant 0 : index
    %c0_5 = arith.constant 0 : index
    %c0_6 = arith.constant 0 : index
    %3 = vector.load %arg3[%c0_4, %c0_5, %c0_6] : memref<1x8x136xf32, #tpu.memory_space<vmem>>, vector<1x8x136xf32>
    %4 = vector.shape_cast %3 : vector<1x8x136xf32> to vector<8x136xf32>
    %c32 = arith.constant 32 : index
    %c0_7 = arith.constant 0 : index
    %5 = vector.load %arg7[%c32, %c0_7] : memref<40x136xf32, #tpu.memory_space<vmem>>, vector<8x136xf32>
    tpu.vector_store %arg7[%c32, %c0_7], %4 {strides = array<i32>} : memref<40x136xf32, #tpu.memory_space<vmem>>, vector<8x136xf32>,
    %c0_8 = arith.constant 0 : index
    %c0_9 = arith.constant 0 : index
    %6 = vector.load %arg7[%c0_8, %c0_9] : memref<40x136xf32, #tpu.memory_space<vmem>>, vector<32x136xf32>
    %c0_10 = arith.constant 0 : index
    %c0_11 = arith.constant 0 : index
    %c0_12 = arith.constant 0 : index
    %7 = vector.load %arg4[%c0_10, %c0_11, %c0_12] : memref<3x136x256xf32, #tpu.memory_space<vmem>>, vector<1x136x256xf32>
    %8 = vector.shape_cast %7 : vector<1x136x256xf32> to vector<136x256xf32>
    %cst = arith.constant dense<0.000000e+00> : vector<32x256xf32>
    %9 = tpu.matmul %6, %8, %cst {dimension_numbers = #tpu.dot_dimension_numbers<[1], [0], [0], [1], [0, 0, 1, 1], [], []>} : vector<32x136xf32>, vector<136x256xf32>, vector<32x256xf32> -> vector<32x256xf32>
    %c1 = arith.constant 1 : index
    %c0_13 = arith.constant 0 : index
    %10 = vector.load %arg7[%c1, %c0_13] : memref<40x136xf32, #tpu.memory_space<vmem>>, vector<32x136xf32>
    %c1_14 = arith.constant 1 : index
    %c0_15 = arith.constant 0 : index
    %c0_16 = arith.constant 0 : index
    %11 = vector.load %arg4[%c1_14, %c0_15, %c0_16] : memref<3x136x256xf32, #tpu.memory_space<vmem>>, vector<1x136x256xf32>
    %12 = vector.shape_cast %11 : vector<1x136x256xf32> to vector<136x256xf32>
    %cst_17 = arith.constant dense<0.000000e+00> : vector<32x256xf32>
    %13 = tpu.matmul %10, %12, %cst_17 {dimension_numbers = #tpu.dot_dimension_numbers<[1], [0], [0], [1], [0, 0, 1, 1], [], []>} : vector<32x136xf32>, vector<136x256xf32>, vector<32x256xf32> -> vector<32x256xf32>
    %14 = arith.addf %9, %13 : vector<32x256xf32>
    %c2 = arith.constant 2 : index
    %c0_18 = arith.constant 0 : index
    %15 = vector.load %arg7[%c2, %c0_18] : memref<40x136xf32, #tpu.memory_space<vmem>>, vector<32x136xf32>
    %c2_19 = arith.constant 2 : index
    %c0_20 = arith.constant 0 : index
    %c0_21 = arith.constant 0 : index
    %16 = vector.load %arg4[%c2_19, %c0_20, %c0_21] : memref<3x136x256xf32, #tpu.memory_space<vmem>>, vector<1x136x256xf32>
    %17 = vector.shape_cast %16 : vector<1x136x256xf32> to vector<136x256xf32>
    %cst_22 = arith.constant dense<0.000000e+00> : vector<32x256xf32>
    %18 = tpu.matmul %15, %17, %cst_22 {dimension_numbers = #tpu.dot_dimension_numbers<[1], [0], [0], [1], [0, 0, 1, 1], [], []>} : vector<32x136xf32>, vector<136x256xf32>, vector<32x256xf32> -> vector<32x256xf32>
    %19 = arith.addf %14, %18 : vector<32x256xf32>
    %c0_23 = arith.constant 0 : index
    %c0_24 = arith.constant 0 : index
    %20 = vector.load %arg5[%c0_23, %c0_24] : memref<1x256xf32, #tpu.memory_space<vmem>>, vector<1x256xf32>
    %21 = vector.broadcast %20 : vector<1x256xf32> to vector<32x256xf32>
    %22 = arith.addf %19, %21 : vector<32x256xf32>
    %c0_25 = arith.constant 0 : index
    %c0_26 = arith.constant 0 : index
    %c0_27 = arith.constant 0 : index
    %23 = vector.load %arg6[%c0_25, %c0_26, %c0_27] : memref<1x32x256xf32, #tpu.memory_space<vmem>>, vector<1x32x256xf32>
    %24 = vector.shape_cast %23 : vector<1x32x256xf32> to vector<32x256xf32>
    %25 = vector.shape_cast %22 : vector<32x256xf32> to vector<1x32x256xf32>
    tpu.vector_store %arg6[%c0_25, %c0_26, %c0_27], %25 {strides = array<i32>} : memref<1x32x256xf32, #tpu.memory_space<vmem>>, vector<1x32x256xf32>,
    return
  }
  func.func @transform_0(%arg0: i32, %arg1: i32) -> (i32, i32, i32) {
    %c0_i32 = arith.constant 0 : i32
    %c0_i32_0 = arith.constant 0 : i32
    return %arg0, %arg1, %c0_i32 : i32, i32, i32
  }
  func.func @transform_1(%arg0: i32, %arg1: i32) -> (i32, i32, i32) {
    %c1_i32 = arith.constant 1 : i32
    %0 = arith.addi %arg1, %c1_i32 : i32
    %c4_i32 = arith.constant 4 : i32
    %1 = arith.muli %0, %c4_i32 : i32
    %c0_i32 = arith.constant 0 : i32
    %c0_i32_0 = arith.constant 0 : i32
    return %arg0, %1, %c0_i32 : i32, i32, i32
  }
  func.func @transform_2(%arg0: i32, %arg1: i32) -> (i32, i32, i32) {
    %c0_i32 = arith.constant 0 : i32
    %c0_i32_0 = arith.constant 0 : i32
    %c0_i32_1 = arith.constant 0 : i32
    %c0_i32_2 = arith.constant 0 : i32
    return %c0_i32, %c0_i32_0, %c0_i32_1 : i32, i32, i32
  }
  func.func @transform_3(%arg0: i32, %arg1: i32) -> (i32, i32) {
    %c0_i32 = arith.constant 0 : i32
    %c0_i32_0 = arith.constant 0 : i32
    %c0_i32_1 = arith.constant 0 : i32
    return %c0_i32, %c0_i32_0 : i32, i32
  }
  func.func @transform_4(%arg0: i32, %arg1: i32) -> (i32, i32, i32) {
    %c0_i32 = arith.constant 0 : i32
    %c0_i32_0 = arith.constant 0 : i32
    return %arg0, %arg1, %c0_i32 : i32, i32, i32
  }
}

</mosaic_0001>

<llo_original>
// kernel: tpu_custom_call.1
$region0: #{tpu_custom_call.1}
  #allocation0 [shape = 'u32[]', space=smem, size = 0x4, offset = 0x4, fixed_abs, tag = 'smem constant byte address 0x4 - core index']
  #allocation1 [shape = 'u32[144,128]{1,0:T(1,128)}', space=vmem, size = 0x12000, scoped, tag = 'internal scratch']
  #allocation2 [shape = 'f32[40,136]{1,0:T(8,128)}', space=vmem, size = 0xa000, scoped, tag = 'scratch operand']
  %s0 = inlined_call_operand.hbm [shape: f32[2,40,136], index: 0, kind: input, shape index: {}]
  %s1 = inlined_call_operand.hbm [shape: f32[2,40,136], index: 1, kind: input, shape index: {}]
  %s2 = inlined_call_operand.hbm [shape: f32[3,136,256], index: 2, kind: input, shape index: {}]
  %s3 = inlined_call_operand.vmem [shape: f32[1,256], index: 3, kind: input, shape index: {}]
  %s4 = inlined_call_operand.hbm [shape: f32[2,32,256], index: 4, kind: output, shape index: {}]
  %s5 = sld [smem:[#allocation0]]
  $region61: #{tpu_custom_call.1} parent=0
    _
  %s7 = ssub.s32 1, %s5
  %s8 = scalar_select 0, %s7, %s5
  $region1: #{tpu_custom_call.1} parent=0
    #allocation3 [shape = 'u8[65536]{0}', space=vmem, size = 0x10000, scoped, tag = 'input window, operand 0']
    #allocation4 [shape = 's32[2]{0}', space=sflag, size = 0x8, scoped, tag = 'scoped memory for tpu_custom_call.1']
    #allocation5 [shape = 's32[2]{0}', space=sflag, size = 0x8, scoped, tag = 'scoped memory for tpu_custom_call.1']
    #allocation6 [shape = 'u8[16384]{0}', space=vmem, size = 0x4000, scoped, tag = 'input window, operand 1']
    #allocation7 [shape = 's32[2]{0}', space=sflag, size = 0x8, scoped, tag = 'scoped memory for tpu_custom_call.1']
    #allocation8 [shape = 'u8[417792]{0}', space=vmem, size = 0x66000, scoped, tag = 'input window, operand 2, single buffered']
    #allocation9 [shape = 'u8[65536]{0}', space=vmem, size = 0x10000, scoped, tag = 'output window, operand 0']
    %9 = vsyncpa [#allocation4], 0
    %s10 = scalar_lea.sflag [#allocation4], 1
    %11 = vsyncpa %s10, 0
    %12 = vsyncpa [#allocation7], 0
    %s13 = scalar_lea.sflag [#allocation7], 1
    %14 = vsyncpa %s13, 0
    %15 = vsyncpa [#allocation5], 0
    %s16 = scalar_lea.sflag [#allocation5], 1
    %17 = vsyncpa %s16, 0
    loop: start=0, step=1, limit=4
    $region2: #{tpu_custom_call.1} parent=1 // loop_pre_header
      _
    $region3: #{tpu_custom_call.1} parent=1 // loop_header
      %s19 = sphi 0, %s23
      %p20 = scmp.ge.s32.totalorder %s19, 4
      %s26 = sphi 0, %s38
      %s27 = sphi 0, %s34
      %s28 = sphi 0, %s26
      %s29 = sphi 0, %s27
      %s30 = sphi 0, %s28
      %s31 = sphi 0, %s29
      %s43 = sphi 0, %s45
      %s46 = sphi 0, %s43
      %s47 = sphi 0, %s46
      %s63 = sphi 0, %s47
      %s75 = sphi 0, %s77
      %s78 = sphi 0, %s75
      %s79 = sphi 0, %s78
      %s95 = sphi 0, %s79
      %s99 = sphi 0, %s99
      %s101 = sphi 0, %s99
      %s102 = sphi 0, %s101
      %s116 = sphi 0, %s102
      %s120 = sphi 0, %s120
      %s122 = sphi 0, %s120
      %s123 = sphi 0, %s122
      %s137 = sphi 0, %s123
      %s145 = sphi 0, %s147
      %s148 = sphi 0, %s145
      %s149 = sphi 0, %s148
      %s165 = sphi 0, %s149
    $region4: #{tpu_custom_call.1} parent=1 // loop_header_branch
      %22 = sbr.rel (%p20) target = $region8
    $region5: #{tpu_custom_call.1} parent=1 // loop_body
      %s24 = ssub.s32 %s19, 1
      %s25 = ssub.s32 %s19, 2
      %s32 = sadd.s32 1, %s27
      %p33 = scmp.ge.s32.totalorder %s32, 1
      %s34 = scalar_select %p33, 0, %s32
      %s35 = sadd.s32 1, %s26
      %s36 = scalar_select %p33, %s35, %s26
      %p37 = scmp.ge.s32.totalorder %s36, 2
      %s38 = scalar_select %p37, 0, %s36
      %s39 = ssub.s32 %s26, %s38
      %s40 = ssub.s32 %s27, %s34
      %s41 = sor.u32 %s39, %s40
      %p42 = scmp.eq.s32.totalorder %s41, 0
      %s44 = sadd.s32 %s43, 1
      %s45 = scalar_select %p42, %s43, %s44
      %p48 = pneg %p42
      %p49 = scmp.eq.s32.totalorder %s19, 1
      %p50 = por %p48, %p49
      %p51 = scmp.ne.s32.totalorder %s43, %s46
      %p52 = scmp.eq.s32.totalorder %s19, 0
      %p53 = por %p51, %p52
      %p54 = scmp.ne.s32.totalorder %s43, %s46
      %p55 = scmp.eq.s32.totalorder %s24, 1
      %p56 = por %p54, %p55
      %p57 = scmp.ne.s32.totalorder %s46, %s47
      %p58 = scmp.eq.s32.totalorder %s24, 0
      %p59 = por %p57, %p58
      %p60 = scmp.ne.s32.totalorder %s46, %s47
      %p61 = scmp.eq.s32.totalorder %s25, 1
      %p62 = por %p60, %p61
      %p64 = scmp.ne.s32.totalorder %s47, %s63
      %p65 = scmp.eq.s32.totalorder %s25, 0
      %p66 = por %p64, %p65
      %s67 = sadd.s32 %s27, 1
      %s68 = smul.u32 %s67, 4
      %s69 = sadd.s32 %s34, 1
      %s70 = smul.u32 %s69, 4
      %s71 = ssub.s32 %s26, %s38
      %s72 = ssub.s32 %s68, %s70
      %s73 = sor.u32 %s71, %s72
      %p74 = scmp.eq.s32.totalorder %s73, 0
      %s76 = sadd.s32 %s75, 1
      %s77 = scalar_select %p74, %s75, %s76
      %p80 = pneg %p74
      %p81 = scmp.eq.s32.totalorder %s19, 1
      %p82 = por %p80, %p81
      %p83 = scmp.ne.s32.totalorder %s75, %s78
      %p84 = scmp.eq.s32.totalorder %s19, 0
      %p85 = por %p83, %p84
      %p86 = scmp.ne.s32.totalorder %s75, %s78
      %p87 = scmp.eq.s32.totalorder %s24, 1
      %p88 = por %p86, %p87
      %p89 = scmp.ne.s32.totalorder %s78, %s79
      %p90 = scmp.eq.s32.totalorder %s24, 0
      %p91 = por %p89, %p90
      %p92 = scmp.ne.s32.totalorder %s78, %s79
      %p93 = scmp.eq.s32.totalorder %s25, 1
      %p94 = por %p92, %p93
      %p96 = scmp.ne.s32.totalorder %s79, %s95
      %p97 = scmp.eq.s32.totalorder %s25, 0
      %p98 = por %p96, %p97
      %s100 = sadd.s32 %s99, 1
      %p103 = scmp.eq.s32.totalorder %s19, 1
      %p104 = scmp.ne.s32.totalorder %s99, %s101
      %p105 = scmp.eq.s32.totalorder %s19, 0
      %p106 = por %p104, %p105
      %p107 = scmp.ne.s32.totalorder %s99, %s101
      %p108 = scmp.eq.s32.totalorder %s24, 1
      %p109 = por %p107, %p108
      %p110 = scmp.ne.s32.totalorder %s101, %s102
      %p111 = scmp.eq.s32.totalorder %s24, 0
      %p112 = por %p110, %p111
      %p113 = scmp.ne.s32.totalorder %s101, %s102
      %p114 = scmp.eq.s32.totalorder %s25, 1
      %p115 = por %p113, %p114
      %p117 = scmp.ne.s32.totalorder %s102, %s116
      %p118 = scmp.eq.s32.totalorder %s25, 0
      %p119 = por %p117, %p118
      %s121 = sadd.s32 %s120, 1
      %p124 = scmp.eq.s32.totalorder %s19, 1
      %p125 = scmp.ne.s32.totalorder %s120, %s122
      %p126 = scmp.eq.s32.totalorder %s19, 0
      %p127 = por %p125, %p126
      %p128 = scmp.ne.s32.totalorder %s120, %s122
      %p129 = scmp.eq.s32.totalorder %s24, 1
      %p130 = por %p128, %p129
      %p131 = scmp.ne.s32.totalorder %s122, %s123
      %p132 = scmp.eq.s32.totalorder %s24, 0
      %p133 = por %p131, %p132
      %p134 = scmp.ne.s32.totalorder %s122, %s123
      %p135 = scmp.eq.s32.totalorder %s25, 1
      %p136 = por %p134, %p135
      %p138 = scmp.ne.s32.totalorder %s123, %s137
      %p139 = scmp.eq.s32.totalorder %s25, 0
      %p140 = por %p138, %p139
      %s141 = ssub.s32 %s26, %s38
      %s142 = ssub.s32 %s27, %s34
      %s143 = sor.u32 %s141, %s142
      %p144 = scmp.eq.s32.totalorder %s143, 0
      %s146 = sadd.s32 %s145, 1
      %s147 = scalar_select %p144, %s145, %s146
      %p150 = pneg %p144
      %p151 = scmp.eq.s32.totalorder %s19, 1
      %p152 = por %p150, %p151
      %p153 = scmp.ne.s32.totalorder %s145, %s148
      %p154 = scmp.eq.s32.totalorder %s19, 0
      %p155 = por %p153, %p154
      %p156 = scmp.ne.s32.totalorder %s145, %s148
      %p157 = scmp.eq.s32.totalorder %s24, 1
      %p158 = por %p156, %p157
      %p159 = scmp.ne.s32.totalorder %s148, %s149
      %p160 = scmp.eq.s32.totalorder %s24, 0
      %p161 = por %p159, %p160
      %p162 = scmp.ne.s32.totalorder %s148, %s149
      %p163 = scmp.eq.s32.totalorder %s25, 1
      %p164 = por %p162, %p163
      %p166 = scmp.ne.s32.totalorder %s149, %s165
      %p167 = scmp.eq.s32.totalorder %s25, 0
      %p168 = por %p166, %p167
      %p169 = scmp.le.s32.totalorder 1, %s19
      %p170 = scmp.lt.s32.totalorder %s19, 3
      %p171 = pnand %p169, %p170
      %p172 = pneg %p171
      // Predicated region
      $region9: #{tpu_custom_call.1} parent=5 // pred_check
        _
      $region10: #{tpu_custom_call.1} parent=5 // pred_check_branch
        %174 = sbr.rel (%p171) target = $region12
      $region11: #{tpu_custom_call.1} parent=5 // pred_region
        %s175 = ssub.s32 %s19, 1
        // Predicated region
        $region13: #{tpu_custom_call.1} parent=11 // pred_check
          %p176 = pneg %p112
        $region14: #{tpu_custom_call.1} parent=11 // pred_check_branch
          %178 = sbr.rel (%p176) target = $region16
        $region15: #{tpu_custom_call.1} parent=11 // pred_region
          %s180 = ssub.s32 13056, 13056
          %181 = vsyncadd [#allocation7], %s180
          %s182 = sshll.u32 [#allocation8], 4
          %s183 = int_to_ptr.vmem [resolvable:$true] %s182
          %188 = dma.hbm_to_vmem [thread:$0]  %s2, 13056, %s183, [#allocation7], 256, 256, 16
        $region16: #{tpu_custom_call.1} parent=11 // pred_fallthru
          _
        // Predicated region
        $region17: #{tpu_custom_call.1} parent=11 // pred_check
          %p189 = pneg %p133
        $region18: #{tpu_custom_call.1} parent=11 // pred_check_branch
          %191 = sbr.rel (%p189) target = $region20
        $region19: #{tpu_custom_call.1} parent=11 // pred_region
          _
        $region20: #{tpu_custom_call.1} parent=11 // pred_fallthru
          _
      $region12: #{tpu_custom_call.1} parent=5 // pred_fallthru
        _
      %p192 = scmp.lt.s32.totalorder %s19, 2
      // Predicated region
      $region21: #{tpu_custom_call.1} parent=5 // pred_check
        %p193 = pneg %p192
      $region22: #{tpu_custom_call.1} parent=5 // pred_check_branch
        %195 = sbr.rel (%p193) target = $region24
      $region23: #{tpu_custom_call.1} parent=5 // pred_region
        // Predicated region
        $region25: #{tpu_custom_call.1} parent=23 // pred_check
          %p196 = pneg %p53
        $region26: #{tpu_custom_call.1} parent=23 // pred_check_branch
          %198 = sbr.rel (%p196) target = $region28
        $region27: #{tpu_custom_call.1} parent=23 // pred_region
          %s199 = sand.u32 %s43, 1
          %s200 = scalar_lea.sflag [#allocation4], %s199
          %s201 = sand.u32 %s43, 1
          %s202 = smul.addr %s201, 64
          %s203 = scalar_lea.vmem [#allocation3], %s202
          %s204 = smul.u32 4, %s27
          %s205 = ssub.s32 5, %s204
          %p206 = scmp.lt.s32.totalorder %s205, 4
          %s207 = scalar_select %p206, %s205, 4
          %s208 = smul.u32 128, %s207
          %s209 = smul.u32 %s208, 2
          %s211 = ssub.s32 1024, %s209
          %212 = vsyncadd %s200, %s211
          %p213 = scmp.ne.s32.totalorder 0, %s209
          %s214 = smul.addr %s204, 2
          %s215 = smul.addr %s26, 10
          %s216 = sadd.s32 %s214, %s215
          %s217 = smul.addr %s216, 128
          %s218 = scalar_lea.hbm %s0, %s217
          %s219 = smul.u32 16, %s207
          %s220 = sshll.u32 %s203, 4
          %s221 = int_to_ptr.vmem [resolvable:$true] %s220
          %s222 = sshll.u32 %s219, 4
          %226 = dma.hbm_to_vmem [thread:$0]  (%p213), %s218, %s222, %s221, %s200, 256, 256, 16
        $region28: #{tpu_custom_call.1} parent=23 // pred_fallthru
          _
        // Predicated region
        $region29: #{tpu_custom_call.1} parent=23 // pred_check
          %p227 = pneg %p85
        $region30: #{tpu_custom_call.1} parent=23 // pred_check_branch
          %229 = sbr.rel (%p227) target = $region32
        $region31: #{tpu_custom_call.1} parent=23 // pred_region
          %s230 = sand.u32 %s19, 1
          %s231 = scalar_lea.sflag [#allocation7], %s230
          %s232 = sand.u32 %s75, 1
          %s233 = smul.addr %s232, 16
          %s234 = scalar_lea.vmem [#allocation6], %s233
          %s235 = sadd.s32 %s27, 1
          %s236 = smul.u32 %s235, 4
          %s238 = ssub.s32 256, 256
          %239 = vsyncadd %s231, %s238
          %s240 = smul.addr %s236, 2
          %s241 = smul.addr %s26, 10
          %s242 = sadd.s32 %s240, %s241
          %s243 = smul.addr %s242, 128
          %s244 = scalar_lea.hbm %s1, %s243
          %s246 = sshll.u32 %s234, 4
          %s247 = int_to_ptr.vmem [resolvable:$true] %s246
          %249 = dma.hbm_to_vmem [thread:$0]  %s244, 256, %s247, %s231
        $region32: #{tpu_custom_call.1} parent=23 // pred_fallthru
          _
      $region24: #{tpu_custom_call.1} parent=5 // pred_fallthru
        _
      %p250 = scmp.le.s32.totalorder 1, %s19
      %p251 = scmp.lt.s32.totalorder %s19, 3
      %p252 = pnand %p250, %p251
      %p253 = pneg %p252
      // Predicated region
      $region33: #{tpu_custom_call.1} parent=5 // pred_check
        _
      $region34: #{tpu_custom_call.1} parent=5 // pred_check_branch
        %255 = sbr.rel (%p252) target = $region36
      $region35: #{tpu_custom_call.1} parent=5 // pred_region
        %s256 = ssub.s32 %s19, 1
        %s257 = sand.u32 %s46, 1
        %s258 = scalar_lea.sflag [#allocation4], %s257
        %s259 = sand.u32 %s46, 1
        %s260 = smul.addr %s259, 64
        %s261 = scalar_lea.vmem [#allocation3], %s260
        // Predicated region
        $region37: #{tpu_custom_call.1} parent=35 // pred_check
          %p262 = pneg %p59
        $region38: #{tpu_custom_call.1} parent=35 // pred_check_branch
          %264 = sbr.rel (%p262) target = $region40
        $region39: #{tpu_custom_call.1} parent=35 // pred_region
          %265 = dma.done %s258, 1024
        $region40: #{tpu_custom_call.1} parent=35 // pred_fallthru
          _
        %s266 = sand.u32 %s24, 1
        %s267 = scalar_lea.sflag [#allocation7], %s266
        %s268 = sand.u32 %s78, 1
        %s269 = smul.addr %s268, 16
        %s270 = scalar_lea.vmem [#allocation6], %s269
        // Predicated region
        $region41: #{tpu_custom_call.1} parent=35 // pred_check
          %p271 = pneg %p91
        $region42: #{tpu_custom_call.1} parent=35 // pred_check_branch
          %273 = sbr.rel (%p271) target = $region44
        $region43: #{tpu_custom_call.1} parent=35 // pred_region
          %274 = dma.done %s267, 256
        $region44: #{tpu_custom_call.1} parent=35 // pred_fallthru
          _
        // Predicated region
        $region45: #{tpu_custom_call.1} parent=35 // pred_check
          %p275 = pneg %p112
        $region46: #{tpu_custom_call.1} parent=35 // pred_check_branch
          %277 = sbr.rel (%p275) target = $region48
        $region47: #{tpu_custom_call.1} parent=35 // pred_region
          %278 = dma.done [#allocation7], 13056
        $region48: #{tpu_custom_call.1} parent=35 // pred_fallthru
          _
        %s279 = sand.u32 %s46, 1
        %s280 = scalar_lea.sflag [#allocation4], %s279
        %s281 = sand.u32 %s46, 1
        %s282 = smul.addr %s281, 64
        %s283 = scalar_lea.vmem [#allocation3], %s282
        %p284 = pneg %p59
        %p285 = pneg %p56
        %s286 = sand.u32 %s24, 1
        %s287 = scalar_lea.sflag [#allocation7], %s286
        %s288 = sand.u32 %s78, 1
        %s289 = smul.addr %s288, 16
        %s290 = scalar_lea.vmem [#allocation6], %s289
        %p291 = pneg %p91
        %p292 = pneg %p88
        %p293 = pneg %p112
        %p294 = pneg %p109
        %p295 = pneg %p133
        %p296 = pneg %p130
        %p297 = pneg %p161
        %p298 = pneg %p158
        %s299 = sand.u32 %s148, 1
        %s300 = scalar_lea.sflag [#allocation5], %s299
        %s301 = sand.u32 %s148, 1
        %s302 = smul.addr %s301, 64
        %s303 = scalar_lea.vmem [#allocation9], %s302
        %s304 = smul.u32 4, %s29
        %s305 = ssub.s32 5, %s304
        %p306 = scmp.lt.s32.totalorder %s305, 4
        %s307 = scalar_select %p306, %s305, 4
        %s308 = smul.u32 128, %s307
        %s309 = smul.u32 %s308, 2
        %s310 = sadd.s32 %s29, 1
        %s311 = smul.u32 %s310, 4
        %s312 = smul.u32 4, %s29
        %v313 = vld [vmem:[%s261] sm:$0xff]
        %v314 = vld [vmem:[%s261 + $0x8] sm:$0xff]
        %v315 = vld [vmem:[%s261 + $0x10] sm:$0xff]
        %v316 = vld [vmem:[%s261 + $0x18] sm:$0xff]
        %v317 = vld [vmem:[%s261 + $0x20] sm:$0xff]
        %v318 = vld [vmem:[%s261 + $0x28] sm:$0xff]
        %v319 = vld [vmem:[%s261 + $0x30] sm:$0xff]
        %v320 = vld [vmem:[%s261 + $0x38] sm:$0xff]
        %321 = vst [vmem:[#allocation2] sm:$0xff] %v313
        %vm322 = vcmask 64512
        %323 = vst.msk [vmem:[#allocation2 + $0x8] sm:$0xff] %vm322, %v314
        %324 = vst [vmem:[#allocation2 + $0x10] sm:$0xff] %v315
        %325 = vst.msk [vmem:[#allocation2 + $0x18] sm:$0xff] %vm322, %v316
        %326 = vst [vmem:[#allocation2 + $0x20] sm:$0xff] %v317
        %327 = vst.msk [vmem:[#allocation2 + $0x28] sm:$0xff] %vm322, %v318
        %328 = vst [vmem:[#allocation2 + $0x30] sm:$0xff] %v319
        %329 = vst.msk [vmem:[#allocation2 + $0x38] sm:$0xff] %vm322, %v320
        %v330 = vld [vmem:[%s270] sm:$0xff]
        %v331 = vld [vmem:[%s270 + $0x8] sm:$0xff]
        %332 = vst [vmem:[#allocation2 + $0x40] sm:$0xff] %v330
        %333 = vst.msk [vmem:[#allocation2 + $0x48] sm:$0xff] %vm322, %v331
        %v334 = vld [vmem:[#allocation2] sm:$0xff]
        %v335 = vld [vmem:[#allocation2 + $0x8] sm:$0xff]
        %v336 = vld [vmem:[#allocation2 + $0x10] sm:$0xff]
        %v337 = vld [vmem:[#allocation2 + $0x18] sm:$0xff]
        %v338 = vld [vmem:[#allocation2 + $0x20] sm:$0xff]
        %v339 = vld [vmem:[#allocation2 + $0x28] sm:$0xff]
        %v340 = vld [vmem:[#allocation2 + $0x30] sm:$0xff]
        %v341 = vld [vmem:[#allocation2 + $0x38] sm:$0xff]
        %v342 = vld [vmem:[#allocation8] sm:$0xff]
        %v343 = vld [vmem:[#allocation8 + $0x8] sm:$0xff]
        %v344 = vld [vmem:[#allocation8 + $0x10] sm:$0xff]
        %v345 = vld [vmem:[#allocation8 + $0x18] sm:$0xff]
        %v346 = vld [vmem:[#allocation8 + $0x20] sm:$0xff]
        %v347 = vld [vmem:[#allocation8 + $0x28] sm:$0xff]
        %v348 = vld [vmem:[#allocation8 + $0x30] sm:$0xff]
        %v349 = vld [vmem:[#allocation8 + $0x38] sm:$0xff]
        %v350 = vld [vmem:[#allocation8 + $0x40] sm:$0xff]
        %v351 = vld [vmem:[#allocation8 + $0x48] sm:$0xff]
        %v352 = vld [vmem:[#allocation8 + $0x50] sm:$0xff]
        %v353 = vld [vmem:[#allocation8 + $0x58] sm:$0xff]
        %v354 = vld [vmem:[#allocation8 + $0x60] sm:$0xff]
        %v355 = vld [vmem:[#allocation8 + $0x68] sm:$0xff]
        %v356 = vld [vmem:[#allocation8 + $0x70] sm:$0xff]
        %v357 = vld [vmem:[#allocation8 + $0x78] sm:$0xff]
        %v358 = vld [vmem:[#allocation8 + $0x80] sm:$0xff]
        %v359 = vld [vmem:[#allocation8 + $0x88] sm:$0xff]
        %v360 = vld [vmem:[#allocation8 + $0x90] sm:$0xff]
        %v361 = vld [vmem:[#allocation8 + $0x98] sm:$0xff]
        %v362 = vld [vmem:[#allocation8 + $0xa0] sm:$0xff]
        %v363 = vld [vmem:[#allocation8 + $0xa8] sm:$0xff]
        %v364 = vld [vmem:[#allocation8 + $0xb0] sm:$0xff]
        %v365 = vld [vmem:[#allocation8 + $0xb8] sm:$0xff]
        %v366 = vld [vmem:[#allocation8 + $0xc0] sm:$0xff]
        %v367 = vld [vmem:[#allocation8 + $0xc8] sm:$0xff]
        %v368 = vld [vmem:[#allocation8 + $0xd0] sm:$0xff]
        %v369 = vld [vmem:[#allocation8 + $0xd8] sm:$0xff]
        %v370 = vld [vmem:[#allocation8 + $0xe0] sm:$0xff]
        %v371 = vld [vmem:[#allocation8 + $0xe8] sm:$0xff]
        %v372 = vld [vmem:[#allocation8 + $0xf0] sm:$0xff]
        %v373 = vld [vmem:[#allocation8 + $0xf8] sm:$0xff]
        %v374 = vld [vmem:[#allocation8 + $0x100] sm:$0xff]
        %v375 = vld [vmem:[#allocation8 + $0x108] sm:$0xff]
        %v376 = vld [vmem:[#allocation2] sm:$0xfe]
        %v377 = vld [vmem:[#allocation2 + $0x8] sm:$0xfe]
        %v378 = vld [vmem:[#allocation2 + $0x40] sm:$0x1]
        %v379 = vld [vmem:[#allocation2 + $0x48] sm:$0x1]
        %s380 = scalar_lea.vmem [#allocation8], 272
        %v381 = vld [vmem:[%s380] sm:$0xff]
        %v382 = vld [vmem:[%s380 + $0x8] sm:$0xff]
        %v383 = vld [vmem:[%s380 + $0x10] sm:$0xff]
        %v384 = vld [vmem:[%s380 + $0x18] sm:$0xff]
        %v385 = vld [vmem:[%s380 + $0x20] sm:$0xff]
        %v386 = vld [vmem:[%s380 + $0x28] sm:$0xff]
        %v387 = vld [vmem:[%s380 + $0x30] sm:$0xff]
        %v388 = vld [vmem:[%s380 + $0x38] sm:$0xff]
        %v389 = vld [vmem:[%s380 + $0x40] sm:$0xff]
        %v390 = vld [vmem:[%s380 + $0x48] sm:$0xff]
        %v391 = vld [vmem:[%s380 + $0x50] sm:$0xff]
        %v392 = vld [vmem:[%s380 + $0x58] sm:$0xff]
        %v393 = vld [vmem:[%s380 + $0x60] sm:$0xff]
        %v394 = vld [vmem:[%s380 + $0x68] sm:$0xff]
        %v395 = vld [vmem:[%s380 + $0x70] sm:$0xff]
        %v396 = vld [vmem:[%s380 + $0x78] sm:$0xff]
        %v397 = vld [vmem:[%s380 + $0x80] sm:$0xff]
        %v398 = vld [vmem:[%s380 + $0x88] sm:$0xff]
        %v399 = vld [vmem:[%s380 + $0x90] sm:$0xff]
        %v400 = vld [vmem:[%s380 + $0x98] sm:$0xff]
        %v401 = vld [vmem:[%s380 + $0xa0] sm:$0xff]
        %v402 = vld [vmem:[%s380 + $0xa8] sm:$0xff]
        %v403 = vld [vmem:[%s380 + $0xb0] sm:$0xff]
        %v404 = vld [vmem:[%s380 + $0xb8] sm:$0xff]
        %v405 = vld [vmem:[%s380 + $0xc0] sm:$0xff]
        %v406 = vld [vmem:[%s380 + $0xc8] sm:$0xff]
        %v407 = vld [vmem:[%s380 + $0xd0] sm:$0xff]
        %v408 = vld [vmem:[%s380 + $0xd8] sm:$0xff]
        %v409 = vld [vmem:[%s380 + $0xe0] sm:$0xff]
        %v410 = vld [vmem:[%s380 + $0xe8] sm:$0xff]
        %v411 = vld [vmem:[%s380 + $0xf0] sm:$0xff]
        %v412 = vld [vmem:[%s380 + $0xf8] sm:$0xff]
        %v413 = vld [vmem:[%s380 + $0x100] sm:$0xff]
        %v414 = vld [vmem:[%s380 + $0x108] sm:$0xff]
        %vm425 = vcmask 1046528
        %v426 = vrot.slane %v376, 1
        %v427 = vrot.slane %v336, 1
        %v428 = vsel %vm425, %v426, %v427
        %v429 = vrot.slane %v377, 1
        %v430 = vrot.slane %v337, 1
        %v431 = vsel %vm425, %v429, %v430
        %v432 = vrot.slane %v338, 1
        %v433 = vsel %vm425, %v427, %v432
        %v434 = vrot.slane %v339, 1
        %v435 = vsel %vm425, %v430, %v434
        %v436 = vrot.slane %v340, 1
        %v437 = vsel %vm425, %v432, %v436
        %v438 = vrot.slane %v341, 1
        %v439 = vsel %vm425, %v434, %v438
        %v440 = vrot.slane %v378, 1
        %v441 = vsel %vm425, %v436, %v440
        %v442 = vrot.slane %v379, 1
        %v443 = vsel %vm425, %v438, %v442
        %v448 = vsel %vm322, %v431, 0
        %v450 = vsel %vm322, %v435, 0
        %v452 = vsel %vm322, %v439, 0
        %v454 = vsel %vm322, %v443, 0
        %456 = vmatprep.subr.mxu0 %v412
        %457 = vmatpush1.msra.mxu0 %v411
        %458 = vmatprep.subr.mxu0 %v410
        %459 = vmatpush1.msra.mxu0 %v409
        %460 = vmatprep.subr.mxu0 %v408
        %461 = vmatpush1.msra.mxu0 %v407
        %462 = vmatprep.subr.mxu0 %v406
        %463 = vmatpush1.msra.mxu0 %v405
        %464 = vmatprep.subr.mxu0 %v404
        %465 = vmatpush1.msra.mxu0 %v403
        %466 = vmatprep.subr.mxu0 %v402
        %467 = vmatpush1.msra.mxu0 %v401
        %468 = vmatprep.subr.mxu0 %v400
        %469 = vmatpush1.msra.mxu0 %v399
        %470 = vmatprep.subr.mxu0 %v398
        %471 = vmatpush1.msra.mxu0 %v397
        %472 = vmatprep.subr.mxu0 %v396
        %473 = vmatpush1.msra.mxu0 %v395
        %474 = vmatprep.subr.mxu0 %v394
        %475 = vmatpush1.msra.mxu0 %v393
        %476 = vmatprep.subr.mxu0 %v392
        %477 = vmatpush1.msra.mxu0 %v391
        %478 = vmatprep.subr.mxu0 %v390
        %479 = vmatpush1.msra.mxu0 %v389
        %480 = vmatprep.subr.mxu0 %v388
        %481 = vmatpush1.msra.mxu0 %v387
        %482 = vmatprep.subr.mxu0 %v386
        %483 = vmatpush1.msra.mxu0 %v385
        %484 = vmatprep.subr.mxu0 %v384
        %485 = vmatpush1.msra.mxu0 %v383
        %486 = vmatprep.subr.mxu0 %v382
        %487 = vmatpush1.msra.mxu0 %v381
        %488 = vmatprep.subr.mxu0 0.0
        %489 = vmatpush2.msra.mxu0 0.0
        %490 = vmatprep.subr.mxu0 0.0
        %491 = vmatpush2.msra.mxu0 0.0
        %492 = vmatprep.subr.mxu0 0.0
        %493 = vmatpush2.msra.mxu0 0.0
        %494 = vmatprep.subr.mxu0 0.0
        %495 = vmatpush2.msra.mxu0 0.0
        %496 = vmatprep.subr.mxu0 0.0
        %497 = vmatpush2.msra.mxu0 0.0
        %498 = vmatprep.subr.mxu0 0.0
        %499 = vmatpush2.msra.mxu0 0.0
        %500 = vmatprep.subr.mxu0 0.0
        %501 = vmatpush2.msra.mxu0 0.0
        %502 = vmatprep.subr.mxu0 0.0
        %503 = vmatpush2.msra.mxu0 0.0
        %504 = vmatprep.subr.mxu0 0.0
        %505 = vmatpush2.msra.mxu0 0.0
        %506 = vmatprep.subr.mxu0 0.0
        %507 = vmatpush2.msra.mxu0 0.0
        %508 = vmatprep.subr.mxu0 0.0
        %509 = vmatpush2.msra.mxu0 0.0
        %510 = vmatprep.subr.mxu0 0.0
        %511 = vmatpush2.msra.mxu0 0.0
        %512 = vmatprep.subr.mxu0 0.0
        %513 = vmatpush2.msra.mxu0 0.0
        %514 = vmatprep.subr.mxu0 0.0
        %515 = vmatpush2.msra.mxu0 0.0
        %516 = vmatprep.subr.mxu0 0.0
        %517 = vmatpush2.msra.mxu0 0.0
        %518 = vmatprep.subr.mxu0 %v414
        %519 = vmatpush2.msra.mxu0 %v413
        %520 = vmatprep.mubr.f32.mxu0 %v448
        %521 = vmatmul.mubr.f32.gmra.mxu0 %v428
        %v522 = vpop.f32.mrf.mxu0
        %v523 = vadd.f32 0.0, %v522
        %v524 = vpop.f32.mrf.mxu0
        %v525 = vadd.f32 0.0, %v524
        %526 = vmatprep.mubr.f32.mxu0 %v450
        %527 = vmatmul.mubr.f32.gmra.mxu0 %v433
        %v528 = vpop.f32.mrf.mxu0
        %v529 = vadd.f32 0.0, %v528
        %v530 = vpop.f32.mrf.mxu0
        %v531 = vadd.f32 0.0, %v530
        %532 = vmatprep.mubr.f32.mxu0 %v452
        %533 = vmatmul.mubr.f32.gmra.mxu0 %v437
        %v534 = vpop.f32.mrf.mxu0
        %v535 = vadd.f32 0.0, %v534
        %v536 = vpop.f32.mrf.mxu0
        %v537 = vadd.f32 0.0, %v536
        %538 = vmatprep.mubr.f32.mxu0 %v454
        %539 = vmatmul.mubr.f32.gmra.mxu0 %v441
        %v540 = vpop.f32.mrf.mxu0
        %v541 = vadd.f32 0.0, %v540
        %v542 = vpop.f32.mrf.mxu0
        %v543 = vadd.f32 0.0, %v542
        %544 = vdwg.mxu0
        %v546 = vsel %vm322, %v335, 0
        %v548 = vsel %vm322, %v337, 0
        %v550 = vsel %vm322, %v339, 0
        %v552 = vsel %vm322, %v341, 0
        %554 = vmatprep.subr.mxu0 %v373
        %555 = vmatpush1.msra.mxu0 %v372
        %556 = vmatprep.subr.mxu0 %v371
        %557 = vmatpush1.msra.mxu0 %v370
        %558 = vmatprep.subr.mxu0 %v369
        %559 = vmatpush1.msra.mxu0 %v368
        %560 = vmatprep.subr.mxu0 %v367
        %561 = vmatpush1.msra.mxu0 %v366
        %562 = vmatprep.subr.mxu0 %v365
        %563 = vmatpush1.msra.mxu0 %v364
        %564 = vmatprep.subr.mxu0 %v363
        %565 = vmatpush1.msra.mxu0 %v362
        %566 = vmatprep.subr.mxu0 %v361
        %567 = vmatpush1.msra.mxu0 %v360
        %568 = vmatprep.subr.mxu0 %v359
        %569 = vmatpush1.msra.mxu0 %v358
        %570 = vmatprep.subr.mxu0 %v357
        %571 = vmatpush1.msra.mxu0 %v356
        %572 = vmatprep.subr.mxu0 %v355
        %573 = vmatpush1.msra.mxu0 %v354
        %574 = vmatprep.subr.mxu0 %v353
        %575 = vmatpush1.msra.mxu0 %v352
        %576 = vmatprep.subr.mxu0 %v351
        %577 = vmatpush1.msra.mxu0 %v350
        %578 = vmatprep.subr.mxu0 %v349
        %579 = vmatpush1.msra.mxu0 %v348
        %580 = vmatprep.subr.mxu0 %v347
        %581 = vmatpush1.msra.mxu0 %v346
        %582 = vmatprep.subr.mxu0 %v345
        %583 = vmatpush1.msra.mxu0 %v344
        %584 = vmatprep.subr.mxu0 %v343
        %585 = vmatpush1.msra.mxu0 %v342
        %586 = vmatprep.subr.mxu0 0.0
        %587 = vmatpush2.msra.mxu0 0.0
        %588 = vmatprep.subr.mxu0 0.0
        %589 = vmatpush2.msra.mxu0 0.0
        %590 = vmatprep.subr.mxu0 0.0
        %591 = vmatpush2.msra.mxu0 0.0
        %592 = vmatprep.subr.mxu0 0.0
        %593 = vmatpush2.msra.mxu0 0.0
        %594 = vmatprep.subr.mxu0 0.0
        %595 = vmatpush2.msra.mxu0 0.0
        %596 = vmatprep.subr.mxu0 0.0
        %597 = vmatpush2.msra.mxu0 0.0
        %598 = vmatprep.subr.mxu0 0.0
        %599 = vmatpush2.msra.mxu0 0.0
        %600 = vmatprep.subr.mxu0 0.0
        %601 = vmatpush2.msra.mxu0 0.0
        %602 = vmatprep.subr.mxu0 0.0
        %603 = vmatpush2.msra.mxu0 0.0
        %604 = vmatprep.subr.mxu0 0.0
        %605 = vmatpush2.msra.mxu0 0.0
        %606 = vmatprep.subr.mxu0 0.0
        %607 = vmatpush2.msra.mxu0 0.0
        %608 = vmatprep.subr.mxu0 0.0
        %609 = vmatpush2.msra.mxu0 0.0
        %610 = vmatprep.subr.mxu0 0.0
        %611 = vmatpush2.msra.mxu0 0.0
        %612 = vmatprep.subr.mxu0 0.0
        %613 = vmatpush2.msra.mxu0 0.0
        %614 = vmatprep.subr.mxu0 0.0
        %615 = vmatpush2.msra.mxu0 0.0
        %616 = vmatprep.subr.mxu0 %v375
        %617 = vmatpush2.msra.mxu0 %v374
        %618 = vmatprep.mubr.f32.mxu0 %v546
        %619 = vmatmul.mubr.f32.gmra.mxu0 %v334
        %v620 = vpop.f32.mrf.mxu0
        %v621 = vadd.f32 %v523, %v620
        %v622 = vpop.f32.mrf.mxu0
        %v623 = vadd.f32 %v525, %v622
        %624 = vmatprep.mubr.f32.mxu0 %v548
        %625 = vmatmul.mubr.f32.gmra.mxu0 %v336
        %v626 = vpop.f32.mrf.mxu0
        %v627 = vadd.f32 %v529, %v626
        %v628 = vpop.f32.mrf.mxu0
        %v629 = vadd.f32 %v531, %v628
        %630 = vmatprep.mubr.f32.mxu0 %v550
        %631 = vmatmul.mubr.f32.gmra.mxu0 %v338
        %v632 = vpop.f32.mrf.mxu0
        %v633 = vadd.f32 %v535, %v632
        %v634 = vpop.f32.mrf.mxu0
        %v635 = vadd.f32 %v537, %v634
        %636 = vmatprep.mubr.f32.mxu0 %v552
        %637 = vmatmul.mubr.f32.gmra.mxu0 %v340
        %v638 = vpop.f32.mrf.mxu0
        %v639 = vadd.f32 %v541, %v638
        %v640 = vpop.f32.mrf.mxu0
        %v641 = vadd.f32 %v543, %v640
        %642 = vdwg.mxu0
        %v643 = vld [vmem:[#allocation2] sm:$0xfc]
        %v644 = vld [vmem:[#allocation2 + $0x8] sm:$0xfc]
        %v645 = vld [vmem:[#allocation2 + $0x40] sm:$0x3]
        %v646 = vld [vmem:[#allocation2 + $0x48] sm:$0x3]
        %s647 = scalar_lea.vmem [#allocation8], 544
        %v648 = vld [vmem:[%s647] sm:$0xff]
        %v649 = vld [vmem:[%s647 + $0x8] sm:$0xff]
        %v650 = vld [vmem:[%s647 + $0x10] sm:$0xff]
        %v651 = vld [vmem:[%s647 + $0x18] sm:$0xff]
        %v652 = vld [vmem:[%s647 + $0x20] sm:$0xff]
        %v653 = vld [vmem:[%s647 + $0x28] sm:$0xff]
        %v654 = vld [vmem:[%s647 + $0x30] sm:$0xff]
        %v655 = vld [vmem:[%s647 + $0x38] sm:$0xff]
        %v656 = vld [vmem:[%s647 + $0x40] sm:$0xff]
        %v657 = vld [vmem:[%s647 + $0x48] sm:$0xff]
        %v658 = vld [vmem:[%s647 + $0x50] sm:$0xff]
        %v659 = vld [vmem:[%s647 + $0x58] sm:$0xff]
        %v660 = vld [vmem:[%s647 + $0x60] sm:$0xff]
        %v661 = vld [vmem:[%s647 + $0x68] sm:$0xff]
        %v662 = vld [vmem:[%s647 + $0x70] sm:$0xff]
        %v663 = vld [vmem:[%s647 + $0x78] sm:$0xff]
        %v664 = vld [vmem:[%s647 + $0x80] sm:$0xff]
        %v665 = vld [vmem:[%s647 + $0x88] sm:$0xff]
        %v666 = vld [vmem:[%s647 + $0x90] sm:$0xff]
        %v667 = vld [vmem:[%s647 + $0x98] sm:$0xff]
        %v668 = vld [vmem:[%s647 + $0xa0] sm:$0xff]
        %v669 = vld [vmem:[%s647 + $0xa8] sm:$0xff]
        %v670 = vld [vmem:[%s647 + $0xb0] sm:$0xff]
        %v671 = vld [vmem:[%s647 + $0xb8] sm:$0xff]
        %v672 = vld [vmem:[%s647 + $0xc0] sm:$0xff]
        %v673 = vld [vmem:[%s647 + $0xc8] sm:$0xff]
        %v674 = vld [vmem:[%s647 + $0xd0] sm:$0xff]
        %v675 = vld [vmem:[%s647 + $0xd8] sm:$0xff]
        %v676 = vld [vmem:[%s647 + $0xe0] sm:$0xff]
        %v677 = vld [vmem:[%s647 + $0xe8] sm:$0xff]
        %v678 = vld [vmem:[%s647 + $0xf0] sm:$0xff]
        %v679 = vld [vmem:[%s647 + $0xf8] sm:$0xff]
        %v680 = vld [vmem:[%s647 + $0x100] sm:$0xff]
        %v681 = vld [vmem:[%s647 + $0x108] sm:$0xff]
        %vm686 = vcmask 1045504
        %v687 = vrot.slane %v643, 2
        %v688 = vrot.slane %v336, 2
        %v689 = vsel %vm686, %v687, %v688
        %v690 = vrot.slane %v644, 2
        %v691 = vrot.slane %v337, 2
        %v692 = vsel %vm686, %v690, %v691
        %v693 = vrot.slane %v338, 2
        %v694 = vsel %vm686, %v688, %v693
        %v695 = vrot.slane %v339, 2
        %v696 = vsel %vm686, %v691, %v695
        %v697 = vrot.slane %v340, 2
        %v698 = vsel %vm686, %v693, %v697
        %v699 = vrot.slane %v341, 2
        %v700 = vsel %vm686, %v695, %v699
        %v701 = vrot.slane %v645, 2
        %v702 = vsel %vm686, %v697, %v701
        %v703 = vrot.slane %v646, 2
        %v704 = vsel %vm686, %v699, %v703
        %v709 = vsel %vm322, %v692, 0
        %v711 = vsel %vm322, %v696, 0
        %v713 = vsel %vm322, %v700, 0
        %v715 = vsel %vm322, %v704, 0
        %717 = vmatprep.subr.mxu0 %v679
        %718 = vmatpush1.msra.mxu0 %v678
        %719 = vmatprep.subr.mxu0 %v677
        %720 = vmatpush1.msra.mxu0 %v676
        %721 = vmatprep.subr.mxu0 %v675
        %722 = vmatpush1.msra.mxu0 %v674
        %723 = vmatprep.subr.mxu0 %v673
        %724 = vmatpush1.msra.mxu0 %v672
        %725 = vmatprep.subr.mxu0 %v671
        %726 = vmatpush1.msra.mxu0 %v670
        %727 = vmatprep.subr.mxu0 %v669
        %728 = vmatpush1.msra.mxu0 %v668
        %729 = vmatprep.subr.mxu0 %v667
        %730 = vmatpush1.msra.mxu0 %v666
        %731 = vmatprep.subr.mxu0 %v665
        %732 = vmatpush1.msra.mxu0 %v664
        %733 = vmatprep.subr.mxu0 %v663
        %734 = vmatpush1.msra.mxu0 %v662
        %735 = vmatprep.subr.mxu0 %v661
        %736 = vmatpush1.msra.mxu0 %v660
        %737 = vmatprep.subr.mxu0 %v659
        %738 = vmatpush1.msra.mxu0 %v658
        %739 = vmatprep.subr.mxu0 %v657
        %740 = vmatpush1.msra.mxu0 %v656
        %741 = vmatprep.subr.mxu0 %v655
        %742 = vmatpush1.msra.mxu0 %v654
        %743 = vmatprep.subr.mxu0 %v653
        %744 = vmatpush1.msra.mxu0 %v652
        %745 = vmatprep.subr.mxu0 %v651
        %746 = vmatpush1.msra.mxu0 %v650
        %747 = vmatprep.subr.mxu0 %v649
        %748 = vmatpush1.msra.mxu0 %v648
        %749 = vmatprep.subr.mxu0 0.0
        %750 = vmatpush2.msra.mxu0 0.0
        %751 = vmatprep.subr.mxu0 0.0
        %752 = vmatpush2.msra.mxu0 0.0
        %753 = vmatprep.subr.mxu0 0.0
        %754 = vmatpush2.msra.mxu0 0.0
        %755 = vmatprep.subr.mxu0 0.0
        %756 = vmatpush2.msra.mxu0 0.0
        %757 = vmatprep.subr.mxu0 0.0
        %758 = vmatpush2.msra.mxu0 0.0
        %759 = vmatprep.subr.mxu0 0.0
        %760 = vmatpush2.msra.mxu0 0.0
        %761 = vmatprep.subr.mxu0 0.0
        %762 = vmatpush2.msra.mxu0 0.0
        %763 = vmatprep.subr.mxu0 0.0
        %764 = vmatpush2.msra.mxu0 0.0
        %765 = vmatprep.subr.mxu0 0.0
        %766 = vmatpush2.msra.mxu0 0.0
        %767 = vmatprep.subr.mxu0 0.0
        %768 = vmatpush2.msra.mxu0 0.0
        %769 = vmatprep.subr.mxu0 0.0
        %770 = vmatpush2.msra.mxu0 0.0
        %771 = vmatprep.subr.mxu0 0.0
        %772 = vmatpush2.msra.mxu0 0.0
        %773 = vmatprep.subr.mxu0 0.0
        %774 = vmatpush2.msra.mxu0 0.0
        %775 = vmatprep.subr.mxu0 0.0
        %776 = vmatpush2.msra.mxu0 0.0
        %777 = vmatprep.subr.mxu0 0.0
        %778 = vmatpush2.msra.mxu0 0.0
        %779 = vmatprep.subr.mxu0 %v681
        %780 = vmatpush2.msra.mxu0 %v680
        %781 = vmatprep.mubr.f32.mxu0 %v709
        %782 = vmatmul.mubr.f32.gmra.mxu0 %v689
        %v783 = vpop.f32.mrf.mxu0
        %v784 = vadd.f32 0.0, %v783
        %v785 = vpop.f32.mrf.mxu0
        %v786 = vadd.f32 0.0, %v785
        %787 = vmatprep.mubr.f32.mxu0 %v711
        %788 = vmatmul.mubr.f32.gmra.mxu0 %v694
        %v789 = vpop.f32.mrf.mxu0
        %v790 = vadd.f32 0.0, %v789
        %v791 = vpop.f32.mrf.mxu0
        %v792 = vadd.f32 0.0, %v791
        %793 = vmatprep.mubr.f32.mxu0 %v713
        %794 = vmatmul.mubr.f32.gmra.mxu0 %v698
        %v795 = vpop.f32.mrf.mxu0
        %v796 = vadd.f32 0.0, %v795
        %v797 = vpop.f32.mrf.mxu0
        %v798 = vadd.f32 0.0, %v797
        %799 = vmatprep.mubr.f32.mxu0 %v715
        %800 = vmatmul.mubr.f32.gmra.mxu0 %v702
        %v801 = vpop.f32.mrf.mxu0
        %v802 = vadd.f32 0.0, %v801
        %v803 = vpop.f32.mrf.mxu0
        %v804 = vadd.f32 0.0, %v803
        %805 = vdwg.mxu0
        %v806 = vadd.f32 %v621, %v784
        %v807 = vadd.f32 %v623, %v786
        %v808 = vadd.f32 %v627, %v790
        %v809 = vadd.f32 %v629, %v792
        %v810 = vadd.f32 %v633, %v796
        %v811 = vadd.f32 %v635, %v798
        %v812 = vadd.f32 %v639, %v802
        %v813 = vadd.f32 %v641, %v804
        %v814 = vld [vmem:[%s3] sm:$0x3]
        %v816 = vlaneseq
        %v817 = vshrl.u32 %v816, 7
        %v818 = vsub.s32 0, %v817
        %v819 = vrot.slane %v814, %v818
        %v820 = vlaneseq
        %v821 = vshrl.u32 %v820, 7
        %v822 = vsub.s32 1, %v821
        %v823 = vrot.slane %v814, %v822
        %v826 = vadd.f32 %v806, %v819
        %v827 = vadd.f32 %v807, %v823
        %v828 = vadd.f32 %v808, %v819
        %v829 = vadd.f32 %v809, %v823
        %v830 = vadd.f32 %v810, %v819
        %v831 = vadd.f32 %v811, %v823
        %v832 = vadd.f32 %v812, %v819
        %v833 = vadd.f32 %v813, %v823
        %834 = vst [vmem:[%s303] sm:$0xff] %v826
        %835 = vst [vmem:[%s303 + $0x8] sm:$0xff] %v827
        %836 = vst [vmem:[%s303 + $0x10] sm:$0xff] %v828
        %837 = vst [vmem:[%s303 + $0x18] sm:$0xff] %v829
        %838 = vst [vmem:[%s303 + $0x20] sm:$0xff] %v830
        %839 = vst [vmem:[%s303 + $0x28] sm:$0xff] %v831
        %840 = vst [vmem:[%s303 + $0x30] sm:$0xff] %v832
        %841 = vst [vmem:[%s303 + $0x38] sm:$0xff] %v833
        %s842 = sand.u32 %s148, 1
        %s843 = scalar_lea.sflag [#allocation5], %s842
        %s844 = sand.u32 %s148, 1
        %s845 = smul.addr %s844, 64
        %s846 = scalar_lea.vmem [#allocation9], %s845
        // Predicated region
        $region49: #{tpu_custom_call.1} parent=35 // pred_check
          %p847 = pneg %p158
        $region50: #{tpu_custom_call.1} parent=35 // pred_check_branch
          %849 = sbr.rel (%p847) target = $region52
        $region51: #{tpu_custom_call.1} parent=35 // pred_region
          %s850 = smul.u32 4, %s29
          %s852 = ssub.s32 1024, 1024
          %853 = vsyncadd %s843, %s852
          %s854 = smul.addr %s850, 2
          %s855 = smul.addr %s28, 8
          %s856 = sadd.s32 %s854, %s855
          %s857 = smul.addr %s856, 128
          %s858 = scalar_lea.hbm %s4, %s857
          %s859 = sshll.u32 %s846, 4
          %s860 = int_to_ptr.vmem [resolvable:$true] %s859
          %865 = dma.vmem_to_hbm [thread:$0]  %s860, 1024, %s858, %s843, 256, 256, 16
        $region52: #{tpu_custom_call.1} parent=35 // pred_fallthru
          _
      $region36: #{tpu_custom_call.1} parent=5 // pred_fallthru
        _
      %p866 = scmp.le.s32.totalorder 2, %s19
      // Predicated region
      $region53: #{tpu_custom_call.1} parent=5 // pred_check
        %p867 = pneg %p866
      $region54: #{tpu_custom_call.1} parent=5 // pred_check_branch
        %869 = sbr.rel (%p867) target = $region56
      $region55: #{tpu_custom_call.1} parent=5 // pred_region
        %s870 = ssub.s32 %s19, 2
        // Predicated region
        $region57: #{tpu_custom_call.1} parent=55 // pred_check
          %p871 = pneg %p164
        $region58: #{tpu_custom_call.1} parent=55 // pred_check_branch
          %873 = sbr.rel (%p871) target = $region60
        $region59: #{tpu_custom_call.1} parent=55 // pred_region
          %s874 = sand.u32 %s149, 1
          %s875 = scalar_lea.sflag [#allocation5], %s874
          %s876 = sand.u32 %s149, 1
          %s877 = smul.addr %s876, 64
          %s878 = scalar_lea.vmem [#allocation9], %s877
          %879 = dma.done %s875, 1024
        $region60: #{tpu_custom_call.1} parent=55 // pred_fallthru
          _
      $region56: #{tpu_custom_call.1} parent=5 // pred_fallthru
        _
    $region6: #{tpu_custom_call.1} parent=1 // loop_footer
      %s23 = sadd.s32 1, %s19
    $region7: #{tpu_custom_call.1} parent=1 // loop_footer_branch
      %18 = sbr.rel target = $region3
    $region8: #{tpu_custom_call.1} parent=1 // loop_exit
      _
    %880 = vsyncpa [#allocation4], 1
    %s881 = scalar_lea.sflag [#allocation4], 1
    %882 = vsyncpa %s881, 1
    %883 = vsyncpa [#allocation7], 1
    %s884 = scalar_lea.sflag [#allocation7], 1
    %885 = vsyncpa %s884, 1
    %886 = vsyncpa [#allocation5], 1
    %s887 = scalar_lea.sflag [#allocation5], 1
    %888 = vsyncpa %s887, 1

</llo_original>
